<compile_context>
chip_gen: v7x
topology: tpu7x:2x2x1
jax: 0.10.0
libtpu: 0.0.40
codegen_flags: <defaults>
</compile_context>

<pallas_src>
import functools

import jax
import jax.numpy as jnp
from jax.experimental import pallas as pl
from jax.experimental.pallas import tpu as pltpu


def _round_up(x, m):
    return ((x + m - 1) // m) * m


# ----------------------------- Pallas kernel --------------------------------
def angle_head_kernel(
    x_ref,                              # [tn, 2*dim]   concat(s, s_initial)
    w_merge_ref, b_merge_ref,           # [2*dim, hid]  (mxu dtype), [1, hid] (f32)
    w1_ref, b1_ref,                     # [nb, hid, hid], [nb, 1, hid]
    w2_ref, b2_ref,                     # [nb, hid, hid], [nb, 1, hid]
    w_out_ref, b_out_ref,               # [hid, out_pad], [1, out_pad]
    out_ref,                            # [tn, out_pad]
    *, num_blocks,
):
    f32 = jnp.float32
    mxu_dtype = w_merge_ref.dtype

    # fused (linear_in + linear_initial):
    #   relu(s) @ w_in + relu(si) @ w_init  ==  relu([s|si]) @ [w_in; w_init]
    h = jnp.maximum(x_ref[...].astype(f32), 0.0)
    x = jnp.dot(h.astype(mxu_dtype), w_merge_ref[...],
                preferred_element_type=f32) + b_merge_ref[...]

    # ResidualBlock1d stack (static unroll; num_blocks is small)
    for blk in range(num_blocks):
        residual = x
        h = jnp.maximum(x, 0.0)
        h = jnp.dot(h.astype(mxu_dtype), w1_ref[blk],
                    preferred_element_type=f32) + b1_ref[blk]
        h = jnp.maximum(h, 0.0)
        h = jnp.dot(h.astype(mxu_dtype), w2_ref[blk],
                    preferred_element_type=f32) + b2_ref[blk]
        x = h + residual

    # final: act -> linear_out (lane-padded to 128 with zero weight columns)
    h = jnp.maximum(x, 0.0)
    out = jnp.dot(h.astype(mxu_dtype), w_out_ref[...],
                  preferred_element_type=f32) + b_out_ref[...]
    out_ref[...] = out.astype(out_ref.dtype)


# ------------------------------ wrapper --------------------------------------
def angle_head_forward(s, s_initial, params, *, num_angles=7, normalize=False,
                       eps=1e-8, row_tile=1024, mxu_dtype=jnp.bfloat16):
    """s, s_initial: [*, dim]  ->  [*, num_angles, 2]"""
    lead_shape = s.shape[:-1]
    dim = s.shape[-1]
    n = 1
    for d in lead_shape:
        n *= d

    hid = params["w_in"].shape[1]
    nb = params["w1"].shape[0]
    out_dim = num_angles * 2
    out_pad = _round_up(out_dim, 128)        # lane-dense output (unmasked vst)
    two_dim = 2 * dim

    # ---- host-side prep: fuse input matmuls, pad output weights, cast to bf16
    s2 = s.reshape(n, dim)
    si2 = s_initial.reshape(n, dim)
    x_cat = jnp.concatenate([s2, si2], axis=-1)                      # [n, 2*dim]

    w_merge = jnp.concatenate([params["w_in"], params["w_init"]], axis=0)
    b_merge = (params["b_in"] + params["b_init"]).astype(jnp.float32)
    w_out = jnp.pad(params["w_out"], ((0, 0), (0, out_pad - out_dim)))
    b_out = jnp.pad(params["b_out"], ((0, 0), (0, out_pad - out_dim)))

    w_merge = w_merge.astype(mxu_dtype)
    w1 = params["w1"].astype(mxu_dtype)
    w2 = params["w2"].astype(mxu_dtype)
    w_out = w_out.astype(mxu_dtype)
    b1 = params["b1"].astype(jnp.float32)
    b2 = params["b2"].astype(jnp.float32)
    b_out = b_out.astype(jnp.float32)

    # ---- row tiling: big tiles for MXU M-depth, pad N to a tile multiple ----
    tn = _round_up(min(max(row_tile, 8), max(n, 1)), 8)
    n_pad = _round_up(n, tn)
    if n_pad != n:
        x_cat = jnp.pad(x_cat, ((0, n_pad - n), (0, 0)))

    # full-array (untiled) specs for weights: index_map pinned to block 0,
    # so they are DMA'd into VMEM once and reused across all grid steps.
    # TODO(synk): pipeline_mode=pl.Buffered(1) would reclaim ~300 KB of double
    # buffering for the constant weights; skipped as a negligible, riskier win.
    def full_spec(shape):
        return pl.BlockSpec(shape, lambda i: (0,) * len(shape))

    grid_spec = pltpu.PrefetchScalarGridSpec(
        num_scalar_prefetch=0,
        grid=(n_pad // tn,),
        in_specs=[
            pl.BlockSpec((tn, two_dim), lambda i: (i, 0)),      # concat(s, si)
            full_spec((two_dim, hid)),                          # w_merge
            full_spec((1, hid)),                                # b_merge
            full_spec((nb, hid, hid)),                          # w1
            full_spec((nb, 1, hid)),                            # b1
            full_spec((nb, hid, hid)),                          # w2
            full_spec((nb, 1, hid)),                            # b2
            full_spec((hid, out_pad)),                          # w_out (padded)
            full_spec((1, out_pad)),                            # b_out (padded)
        ],
        out_specs=pl.BlockSpec((tn, out_pad), lambda i: (i, 0)),
    )

    itemsize = jnp.dtype(mxu_dtype).itemsize
    flops = 2 * n_pad * (two_dim * hid + nb * 2 * hid * hid + hid * out_pad)
    bytes_accessed = (
        n_pad * two_dim * 4                       # input slab (f32)
        + n_pad * out_pad * 4                     # output slab
        + (two_dim * hid + 2 * nb * hid * hid + hid * out_pad) * itemsize
        + (hid + 2 * nb * hid + out_pad) * 4      # biases (f32)
    )

    out2 = pl.pallas_call(
        functools.partial(angle_head_kernel, num_blocks=nb),
        out_shape=jax.ShapeDtypeStruct((n_pad, out_pad), s.dtype),
        grid_spec=grid_spec,
        compiler_params=pltpu.CompilerParams(
            dimension_semantics=("parallel",)),
        cost_estimate=pl.CostEstimate(
            flops=flops, transcendentals=0, bytes_accessed=bytes_accessed),
    )(x_cat, w_merge, b_merge, w1, b1, w2, b2, w_out, b_out)

    out = out2[:n, :out_dim].reshape(lead_shape + (num_angles, 2))
    if normalize:
        # default is normalize=False; kept outside the kernel as cheap glue
        norm = jnp.sqrt(jnp.sum(out * out, axis=-1, keepdims=True))
        out = out / jnp.maximum(norm, eps)
    return out


# --------------------------- pure-JAX reference ------------------------------
def angle_head_reference(s, s_initial, params, *, num_angles=7):
    relu = lambda x: jnp.maximum(x, 0.0)
    si = relu(s_initial) @ params["w_init"] + params["b_init"][0]
    x = relu(s) @ params["w_in"] + params["b_in"][0]
    x = x + si
    nb = params["w1"].shape[0]
    for blk in range(nb):
        r = x
        h = relu(x) @ params["w1"][blk] + params["b1"][blk, 0]
        h = relu(h) @ params["w2"][blk] + params["b2"][blk, 0]
        x = h + r
    x = relu(x) @ params["w_out"] + params["b_out"][0]
    return x.reshape(s.shape[:-1] + (num_angles, 2))


# --------------------------------- main ---------------------------------------
if __name__ == "__main__":
    # Small shapes consistent with the module's forward: s, s_initial: [*, dim]
    batch, seq = 2, 8           # leading dims "*"
    dim = 32                    # input channel dim
    hidden_dim = 128            # hidden channel dim
    num_blocks = 2
    num_angles = 7

    key = jax.random.PRNGKey(0)
    ks = jax.random.split(key, 16)

    def winit(k, shape, scale=0.05):
        return (scale * jax.random.normal(k, shape)).astype(jnp.float32)

    params = {
        "w_in":   winit(ks[0], (dim, hidden_dim)),
        "b_in":   winit(ks[1], (1, hidden_dim)),
        "w_init": winit(ks[2], (dim, hidden_dim)),
        "b_init": winit(ks[3], (1, hidden_dim)),
        "w1":     winit(ks[4], (num_blocks, hidden_dim, hidden_dim)),
        "b1":     winit(ks[5], (num_blocks, 1, hidden_dim)),
        "w2":     winit(ks[6], (num_blocks, hidden_dim, hidden_dim)),
        "b2":     winit(ks[7], (num_blocks, 1, hidden_dim)),
        "w_out":  winit(ks[8], (hidden_dim, num_angles * 2)),
        "b_out":  winit(ks[9], (1, num_angles * 2)),
    }

    s = jax.random.normal(ks[10], (batch, seq, dim), dtype=jnp.float32)
    s_initial = jax.random.normal(ks[11], (batch, seq, dim), dtype=jnp.float32)

    out = angle_head_forward(s, s_initial, params, num_angles=num_angles)
    out = jax.block_until_ready(out)
    ref = angle_head_reference(s, s_initial, params, num_angles=num_angles)
    assert out.shape == (batch, seq, num_angles, 2), out.shape
    # bf16 MXU operands, f32 accumulation -> loosened tolerance vs f32 reference
    assert float(jnp.max(jnp.abs(out - ref))) < 2e-2, "mismatch vs reference"

    # also exercise the N-padding path (N not a multiple of the row tile / 8)
    s_odd = jax.random.normal(ks[12], (3, 5, dim), dtype=jnp.float32)
    si_odd = jax.random.normal(ks[13], (3, 5, dim), dtype=jnp.float32)
    out_odd = jax.block_until_ready(
        angle_head_forward(s_odd, si_odd, params,
                           num_angles=num_angles, row_tile=256))
    ref_odd = angle_head_reference(s_odd, si_odd, params, num_angles=num_angles)
    assert out_odd.shape == (3, 5, num_angles, 2), out_odd.shape
    assert float(jnp.max(jnp.abs(out_odd - ref_odd))) < 2e-2, "mismatch (padded N)"

    print("KERNEL_OK")
</pallas_src>

<mosaic_0001>
module attributes {stable_mosaic.version = 11 : i64} {
  func.func @angle_head_kernel(%arg0: i32, %arg1: memref<16x64xf32, #tpu.memory_space<vmem>>, %arg2: memref<64x128xbf16, #tpu.memory_space<vmem>>, %arg3: memref<1x128xf32, #tpu.memory_space<vmem>>, %arg4: memref<2x128x128xbf16, #tpu.memory_space<vmem>>, %arg5: memref<2x1x128xf32, #tpu.memory_space<vmem>>, %arg6: memref<2x128x128xbf16, #tpu.memory_space<vmem>>, %arg7: memref<2x1x128xf32, #tpu.memory_space<vmem>>, %arg8: memref<128x128xbf16, #tpu.memory_space<vmem>>, %arg9: memref<1x128xf32, #tpu.memory_space<vmem>>, %arg10: memref<16x128xf32, #tpu.memory_space<vmem>>) attributes {dimension_semantics = [#tpu.dimension_semantics<parallel>], iteration_bounds = array<i64: 1>, scalar_prefetch = 0 : i64, scratch_operands = 0 : i64, tpu.core_type = #tpu.core_type<tc>, window_params = [{transform_indices = @transform_0, window_bounds = array<i64: 16, 64>}, {pipeline_mode = #tpu.pipeline_mode<synchronous>, transform_indices = @transform_1, window_bounds = array<i64: 64, 128>}, {pipeline_mode = #tpu.pipeline_mode<synchronous>, transform_indices = @transform_2, window_bounds = array<i64: 1, 128>}, {pipeline_mode = #tpu.pipeline_mode<synchronous>, transform_indices = @transform_3, window_bounds = array<i64: 2, 128, 128>}, {pipeline_mode = #tpu.pipeline_mode<synchronous>, transform_indices = @transform_4, window_bounds = array<i64: 2, 1, 128>}, {pipeline_mode = #tpu.pipeline_mode<synchronous>, transform_indices = @transform_5, window_bounds = array<i64: 2, 128, 128>}, {pipeline_mode = #tpu.pipeline_mode<synchronous>, transform_indices = @transform_6, window_bounds = array<i64: 2, 1, 128>}, {pipeline_mode = #tpu.pipeline_mode<synchronous>, transform_indices = @transform_7, window_bounds = array<i64: 128, 128>}, {pipeline_mode = #tpu.pipeline_mode<synchronous>, transform_indices = @transform_8, window_bounds = array<i64: 1, 128>}, {transform_indices = @transform_9, window_bounds = array<i64: 16, 128>}]} {
    %c0 = arith.constant 0 : index
    %c0_0 = arith.constant 0 : index
    %0 = vector.load %arg1[%c0, %c0_0] : memref<16x64xf32, #tpu.memory_space<vmem>>, vector<16x64xf32>
    %cst = arith.constant 0.000000e+00 : f32
    %1 = vector.broadcast %cst : f32 to vector<16x64xf32>
    %2 = arith.maximumf %0, %1 : vector<16x64xf32>
    %3 = arith.truncf %2 : vector<16x64xf32> to vector<16x64xbf16>
    %c0_1 = arith.constant 0 : index
    %c0_2 = arith.constant 0 : index
    %4 = vector.load %arg2[%c0_1, %c0_2] : memref<64x128xbf16, #tpu.memory_space<vmem>>, vector<64x128xbf16>
    %cst_3 = arith.constant dense<0.000000e+00> : vector<16x128xf32>
    %5 = tpu.matmul %3, %4, %cst_3 {dimension_numbers = #tpu.dot_dimension_numbers<[1], [0], [0], [1], [0, 0, 1, 1], [], []>} : vector<16x64xbf16>, vector<64x128xbf16>, vector<16x128xf32> -> vector<16x128xf32>
    %c0_4 = arith.constant 0 : index
    %c0_5 = arith.constant 0 : index
    %6 = vector.load %arg3[%c0_4, %c0_5] : memref<1x128xf32, #tpu.memory_space<vmem>>, vector<1x128xf32>
    %7 = vector.broadcast %6 : vector<1x128xf32> to vector<16x128xf32>
    %8 = arith.addf %5, %7 : vector<16x128xf32>
    %cst_6 = arith.constant 0.000000e+00 : f32
    %9 = vector.broadcast %cst_6 : f32 to vector<16x128xf32>
    %10 = arith.maximumf %8, %9 : vector<16x128xf32>
    %11 = arith.truncf %10 : vector<16x128xf32> to vector<16x128xbf16>
    %c0_7 = arith.constant 0 : index
    %c0_8 = arith.constant 0 : index
    %c0_9 = arith.constant 0 : index
    %12 = vector.load %arg4[%c0_7, %c0_8, %c0_9] : memref<2x128x128xbf16, #tpu.memory_space<vmem>>, vector<1x128x128xbf16>
    %13 = vector.shape_cast %12 : vector<1x128x128xbf16> to vector<128x128xbf16>
    %cst_10 = arith.constant dense<0.000000e+00> : vector<16x128xf32>
    %14 = tpu.matmul %11, %13, %cst_10 {dimension_numbers = #tpu.dot_dimension_numbers<[1], [0], [0], [1], [0, 0, 1, 1], [], []>} : vector<16x128xbf16>, vector<128x128xbf16>, vector<16x128xf32> -> vector<16x128xf32>
    %c0_11 = arith.constant 0 : index
    %c0_12 = arith.constant 0 : index
    %c0_13 = arith.constant 0 : index
    %15 = vector.load %arg5[%c0_11, %c0_12, %c0_13] : memref<2x1x128xf32, #tpu.memory_space<vmem>>, vector<1x1x128xf32>
    %16 = vector.shape_cast %15 : vector<1x1x128xf32> to vector<1x128xf32>
    %17 = vector.broadcast %16 : vector<1x128xf32> to vector<16x128xf32>
    %18 = arith.addf %14, %17 : vector<16x128xf32>
    %cst_14 = arith.constant 0.000000e+00 : f32
    %19 = vector.broadcast %cst_14 : f32 to vector<16x128xf32>
    %20 = arith.maximumf %18, %19 : vector<16x128xf32>
    %21 = arith.truncf %20 : vector<16x128xf32> to vector<16x128xbf16>
    %c0_15 = arith.constant 0 : index
    %c0_16 = arith.constant 0 : index
    %c0_17 = arith.constant 0 : index
    %22 = vector.load %arg6[%c0_15, %c0_16, %c0_17] : memref<2x128x128xbf16, #tpu.memory_space<vmem>>, vector<1x128x128xbf16>
    %23 = vector.shape_cast %22 : vector<1x128x128xbf16> to vector<128x128xbf16>
    %cst_18 = arith.constant dense<0.000000e+00> : vector<16x128xf32>
    %24 = tpu.matmul %21, %23, %cst_18 {dimension_numbers = #tpu.dot_dimension_numbers<[1], [0], [0], [1], [0, 0, 1, 1], [], []>} : vector<16x128xbf16>, vector<128x128xbf16>, vector<16x128xf32> -> vector<16x128xf32>
    %c0_19 = arith.constant 0 : index
    %c0_20 = arith.constant 0 : index
    %c0_21 = arith.constant 0 : index
    %25 = vector.load %arg7[%c0_19, %c0_20, %c0_21] : memref<2x1x128xf32, #tpu.memory_space<vmem>>, vector<1x1x128xf32>
    %26 = vector.shape_cast %25 : vector<1x1x128xf32> to vector<1x128xf32>
    %27 = vector.broadcast %26 : vector<1x128xf32> to vector<16x128xf32>
    %28 = arith.addf %24, %27 : vector<16x128xf32>
    %29 = arith.addf %28, %8 : vector<16x128xf32>
    %cst_22 = arith.constant 0.000000e+00 : f32
    %30 = vector.broadcast %cst_22 : f32 to vector<16x128xf32>
    %31 = arith.maximumf %29, %30 : vector<16x128xf32>
    %32 = arith.truncf %31 : vector<16x128xf32> to vector<16x128xbf16>
    %c1 = arith.constant 1 : index
    %c0_23 = arith.constant 0 : index
    %c0_24 = arith.constant 0 : index
    %33 = vector.load %arg4[%c1, %c0_23, %c0_24] : memref<2x128x128xbf16, #tpu.memory_space<vmem>>, vector<1x128x128xbf16>
    %34 = vector.shape_cast %33 : vector<1x128x128xbf16> to vector<128x128xbf16>
    %cst_25 = arith.constant dense<0.000000e+00> : vector<16x128xf32>
    %35 = tpu.matmul %32, %34, %cst_25 {dimension_numbers = #tpu.dot_dimension_numbers<[1], [0], [0], [1], [0, 0, 1, 1], [], []>} : vector<16x128xbf16>, vector<128x128xbf16>, vector<16x128xf32> -> vector<16x128xf32>
    %c1_26 = arith.constant 1 : index
    %c0_27 = arith.constant 0 : index
    %c0_28 = arith.constant 0 : index
    %36 = vector.load %arg5[%c1_26, %c0_27, %c0_28] : memref<2x1x128xf32, #tpu.memory_space<vmem>>, vector<1x1x128xf32>
    %37 = vector.shape_cast %36 : vector<1x1x128xf32> to vector<1x128xf32>
    %38 = vector.broadcast %37 : vector<1x128xf32> to vector<16x128xf32>
    %39 = arith.addf %35, %38 : vector<16x128xf32>
    %cst_29 = arith.constant 0.000000e+00 : f32
    %40 = vector.broadcast %cst_29 : f32 to vector<16x128xf32>
    %41 = arith.maximumf %39, %40 : vector<16x128xf32>
    %42 = arith.truncf %41 : vector<16x128xf32> to vector<16x128xbf16>
    %c1_30 = arith.constant 1 : index
    %c0_31 = arith.constant 0 : index
    %c0_32 = arith.constant 0 : index
    %43 = vector.load %arg6[%c1_30, %c0_31, %c0_32] : memref<2x128x128xbf16, #tpu.memory_space<vmem>>, vector<1x128x128xbf16>
    %44 = vector.shape_cast %43 : vector<1x128x128xbf16> to vector<128x128xbf16>
    %cst_33 = arith.constant dense<0.000000e+00> : vector<16x128xf32>
    %45 = tpu.matmul %42, %44, %cst_33 {dimension_numbers = #tpu.dot_dimension_numbers<[1], [0], [0], [1], [0, 0, 1, 1], [], []>} : vector<16x128xbf16>, vector<128x128xbf16>, vector<16x128xf32> -> vector<16x128xf32>
    %c1_34 = arith.constant 1 : index
    %c0_35 = arith.constant 0 : index
    %c0_36 = arith.constant 0 : index
    %46 = vector.load %arg7[%c1_34, %c0_35, %c0_36] : memref<2x1x128xf32, #tpu.memory_space<vmem>>, vector<1x1x128xf32>
    %47 = vector.shape_cast %46 : vector<1x1x128xf32> to vector<1x128xf32>
    %48 = vector.broadcast %47 : vector<1x128xf32> to vector<16x128xf32>
    %49 = arith.addf %45, %48 : vector<16x128xf32>
    %50 = arith.addf %49, %29 : vector<16x128xf32>
    %cst_37 = arith.constant 0.000000e+00 : f32
    %51 = vector.broadcast %cst_37 : f32 to vector<16x128xf32>
    %52 = arith.maximumf %50, %51 : vector<16x128xf32>
    %53 = arith.truncf %52 : vector<16x128xf32> to vector<16x128xbf16>
    %c0_38 = arith.constant 0 : index
    %c0_39 = arith.constant 0 : index
    %54 = vector.load %arg8[%c0_38, %c0_39] : memref<128x128xbf16, #tpu.memory_space<vmem>>, vector<128x128xbf16>
    %cst_40 = arith.constant dense<0.000000e+00> : vector<16x128xf32>
    %55 = tpu.matmul %53, %54, %cst_40 {dimension_numbers = #tpu.dot_dimension_numbers<[1], [0], [0], [1], [0, 0, 1, 1], [], []>} : vector<16x128xbf16>, vector<128x128xbf16>, vector<16x128xf32> -> vector<16x128xf32>
    %c0_41 = arith.constant 0 : index
    %c0_42 = arith.constant 0 : index
    %56 = vector.load %arg9[%c0_41, %c0_42] : memref<1x128xf32, #tpu.memory_space<vmem>>, vector<1x128xf32>
    %57 = vector.broadcast %56 : vector<1x128xf32> to vector<16x128xf32>
    %58 = arith.addf %55, %57 : vector<16x128xf32>
    %c0_43 = arith.constant 0 : index
    %c0_44 = arith.constant 0 : index
    %59 = vector.load %arg10[%c0_43, %c0_44] : memref<16x128xf32, #tpu.memory_space<vmem>>, vector<16x128xf32>
    tpu.vector_store %arg10[%c0_43, %c0_44], %58 {strides = array<i32>} : memref<16x128xf32, #tpu.memory_space<vmem>>, vector<16x128xf32>,
    return
  }
  func.func @transform_0(%arg0: i32) -> (i32, i32) {
    %c0_i32 = arith.constant 0 : i32
    %c0_i32_0 = arith.constant 0 : i32
    return %arg0, %c0_i32 : i32, i32
  }
  func.func @transform_1(%arg0: i32) -> (i32, i32) {
    %c0_i32 = arith.constant 0 : i32
    %c0_i32_0 = arith.constant 0 : i32
    %c0_i32_1 = arith.constant 0 : i32
    return %c0_i32, %c0_i32_0 : i32, i32
  }
  func.func @transform_2(%arg0: i32) -> (i32, i32) {
    %c0_i32 = arith.constant 0 : i32
    %c0_i32_0 = arith.constant 0 : i32
    %c0_i32_1 = arith.constant 0 : i32
    return %c0_i32, %c0_i32_0 : i32, i32
  }
  func.func @transform_3(%arg0: i32) -> (i32, i32, i32) {
    %c0_i32 = arith.constant 0 : i32
    %c0_i32_0 = arith.constant 0 : i32
    %c0_i32_1 = arith.constant 0 : i32
    %c0_i32_2 = arith.constant 0 : i32
    return %c0_i32, %c0_i32_0, %c0_i32_1 : i32, i32, i32
  }
  func.func @transform_4(%arg0: i32) -> (i32, i32, i32) {
    %c0_i32 = arith.constant 0 : i32
    %c0_i32_0 = arith.constant 0 : i32
    %c0_i32_1 = arith.constant 0 : i32
    %c0_i32_2 = arith.constant 0 : i32
    return %c0_i32, %c0_i32_0, %c0_i32_1 : i32, i32, i32
  }
  func.func @transform_5(%arg0: i32) -> (i32, i32, i32) {
    %c0_i32 = arith.constant 0 : i32
    %c0_i32_0 = arith.constant 0 : i32
    %c0_i32_1 = arith.constant 0 : i32
    %c0_i32_2 = arith.constant 0 : i32
    return %c0_i32, %c0_i32_0, %c0_i32_1 : i32, i32, i32
  }
  func.func @transform_6(%arg0: i32) -> (i32, i32, i32) {
    %c0_i32 = arith.constant 0 : i32
    %c0_i32_0 = arith.constant 0 : i32
    %c0_i32_1 = arith.constant 0 : i32
    %c0_i32_2 = arith.constant 0 : i32
    return %c0_i32, %c0_i32_0, %c0_i32_1 : i32, i32, i32
  }
  func.func @transform_7(%arg0: i32) -> (i32, i32) {
    %c0_i32 = arith.constant 0 : i32
    %c0_i32_0 = arith.constant 0 : i32
    %c0_i32_1 = arith.constant 0 : i32
    return %c0_i32, %c0_i32_0 : i32, i32
  }
  func.func @transform_8(%arg0: i32) -> (i32, i32) {
    %c0_i32 = arith.constant 0 : i32
    %c0_i32_0 = arith.constant 0 : i32
    %c0_i32_1 = arith.constant 0 : i32
    return %c0_i32, %c0_i32_0 : i32, i32
  }
  func.func @transform_9(%arg0: i32) -> (i32, i32) {
    %c0_i32 = arith.constant 0 : i32
    %c0_i32_0 = arith.constant 0 : i32
    return %arg0, %c0_i32 : i32, i32
  }
}

</mosaic_0001>

<llo_original>
// kernel: tpu_custom_call.1
$region0: #{tpu_custom_call.1}
  #allocation0 [shape = 'u32[]', space=smem, size = 0x4, offset = 0x4, fixed_abs, tag = 'smem constant byte address 0x4 - core index']
  #allocation1 [shape = 'u32[144,128]{1,0:T(1,128)}', space=vmem, size = 0x12000, scoped, tag = 'internal scratch']
  %s0 = inlined_call_operand.hbm [shape: f32[16,64], index: 0, kind: input, shape index: {}]
  %s1 = inlined_call_operand.hbm [shape: bf16[64,128], index: 1, kind: input, shape index: {}]
  %s2 = inlined_call_operand.vmem [shape: f32[1,128], index: 2, kind: input, shape index: {}]
  %s3 = inlined_call_operand.hbm [shape: bf16[2,128,128], index: 3, kind: input, shape index: {}]
  %s4 = inlined_call_operand.vmem [shape: f32[2,1,128], index: 4, kind: input, shape index: {}]
  %s5 = inlined_call_operand.hbm [shape: bf16[2,128,128], index: 5, kind: input, shape index: {}]
  %s6 = inlined_call_operand.vmem [shape: f32[2,1,128], index: 6, kind: input, shape index: {}]
  %s7 = inlined_call_operand.hbm [shape: bf16[128,128], index: 7, kind: input, shape index: {}]
  %s8 = inlined_call_operand.vmem [shape: f32[1,128], index: 8, kind: input, shape index: {}]
  %s9 = inlined_call_operand.hbm [shape: f32[16,128], index: 9, kind: output, shape index: {}]
  %s10 = sld [smem:[#allocation0]]
  $region66: #{tpu_custom_call.1} parent=0
    _
  %s12 = ssub.s32 1, %s10
  %s13 = scalar_select 0, %s12, %s10
  $region1: #{tpu_custom_call.1} parent=0
    #allocation2 [shape = 'u8[8192]{0}', space=vmem, size = 0x2000, scoped, tag = 'input window, operand 0, single buffered']
    #allocation3 [shape = 's32[1]{0}', space=sflag, size = 0x4, scoped, tag = 'scoped memory for tpu_custom_call.1']
    #allocation4 [shape = 's32[1]{0}', space=sflag, size = 0x4, scoped, tag = 'scoped memory for tpu_custom_call.1']
    #allocation5 [shape = 'u8[16384]{0}', space=vmem, size = 0x4000, scoped, tag = 'input window, operand 1, single buffered']
    #allocation6 [shape = 's32[1]{0}', space=sflag, size = 0x4, scoped, tag = 'scoped memory for tpu_custom_call.1']
    #allocation7 [shape = 'u8[65536]{0}', space=vmem, size = 0x10000, scoped, tag = 'input window, operand 3, single buffered']
    #allocation8 [shape = 'u8[65536]{0}', space=vmem, size = 0x10000, scoped, tag = 'input window, operand 5, single buffered']
    #allocation9 [shape = 's32[1]{0}', space=sflag, size = 0x4, scoped, tag = 'scoped memory for tpu_custom_call.1']
    #allocation10 [shape = 'u8[32768]{0}', space=vmem, size = 0x8000, scoped, tag = 'input window, operand 7, single buffered']
    #allocation11 [shape = 'u8[8192]{0}', space=vmem, size = 0x2000, scoped, tag = 'output window, operand 0, single buffered']
    %14 = vsyncpa [#allocation3], 0
    %15 = vsyncpa [#allocation6], 0
    %16 = vsyncpa [#allocation9], 0
    %17 = vsyncpa [#allocation4], 0
    // Predicated region
    $region2: #{tpu_custom_call.1} parent=1 // pred_check
      _
    $region3: #{tpu_custom_call.1} parent=1 // pred_check_branch
      %19 = sbr.rel (0) target = $region5
    $region4: #{tpu_custom_call.1} parent=1 // pred_region
      %s21 = ssub.s32 256, 256
      %22 = vsyncadd [#allocation3], %s21
      %s23 = sshll.u32 [#allocation2], 4
      %s24 = int_to_ptr.vmem [resolvable:$true] %s23
      %29 = dma.hbm_to_vmem [thread:$0]  %s0, 256, %s24, [#allocation3], 128, 128, 8
    $region5: #{tpu_custom_call.1} parent=1 // pred_fallthru
      _
    // Predicated region
    $region6: #{tpu_custom_call.1} parent=1 // pred_check
      _
    $region7: #{tpu_custom_call.1} parent=1 // pred_check_branch
      %31 = sbr.rel (0) target = $region9
    $region8: #{tpu_custom_call.1} parent=1 // pred_region
      %s33 = ssub.s32 512, 512
      %34 = vsyncadd [#allocation6], %s33
      %s35 = sshll.u32 [#allocation5], 4
      %s36 = int_to_ptr.vmem [resolvable:$true] %s35
      %41 = dma.hbm_to_vmem [thread:$0]  %s1, 512, %s36, [#allocation6], 64, 64, 4
    $region9: #{tpu_custom_call.1} parent=1 // pred_fallthru
      _
    // Predicated region
    $region10: #{tpu_custom_call.1} parent=1 // pred_check
      _
    $region11: #{tpu_custom_call.1} parent=1 // pred_check_branch
      %43 = sbr.rel (0) target = $region13
    $region12: #{tpu_custom_call.1} parent=1 // pred_region
      _
    $region13: #{tpu_custom_call.1} parent=1 // pred_fallthru
      _
    // Predicated region
    $region14: #{tpu_custom_call.1} parent=1 // pred_check
      _
    $region15: #{tpu_custom_call.1} parent=1 // pred_check_branch
      %45 = sbr.rel (0) target = $region17
    $region16: #{tpu_custom_call.1} parent=1 // pred_region
      %s47 = ssub.s32 2048, 2048
      %48 = vsyncadd [#allocation6], %s47
      %s49 = sshll.u32 [#allocation7], 4
      %s50 = int_to_ptr.vmem [resolvable:$true] %s49
      %55 = dma.hbm_to_vmem [thread:$0]  %s3, 2048, %s50, [#allocation6], 64, 64, 4
    $region17: #{tpu_custom_call.1} parent=1 // pred_fallthru
      _
    // Predicated region
    $region18: #{tpu_custom_call.1} parent=1 // pred_check
      _
    $region19: #{tpu_custom_call.1} parent=1 // pred_check_branch
      %57 = sbr.rel (0) target = $region21
    $region20: #{tpu_custom_call.1} parent=1 // pred_region
      _
    $region21: #{tpu_custom_call.1} parent=1 // pred_fallthru
      _
    // Predicated region
    $region22: #{tpu_custom_call.1} parent=1 // pred_check
      _
    $region23: #{tpu_custom_call.1} parent=1 // pred_check_branch
      %59 = sbr.rel (0) target = $region25
    $region24: #{tpu_custom_call.1} parent=1 // pred_region
      %s61 = ssub.s32 2048, 2048
      %62 = vsyncadd [#allocation9], %s61
      %s63 = sshll.u32 [#allocation8], 4
      %s64 = int_to_ptr.vmem [resolvable:$true] %s63
      %69 = dma.hbm_to_vmem [thread:$0]  %s5, 2048, %s64, [#allocation9], 64, 64, 4
    $region25: #{tpu_custom_call.1} parent=1 // pred_fallthru
      _
    // Predicated region
    $region26: #{tpu_custom_call.1} parent=1 // pred_check
      _
    $region27: #{tpu_custom_call.1} parent=1 // pred_check_branch
      %71 = sbr.rel (0) target = $region29
    $region28: #{tpu_custom_call.1} parent=1 // pred_region
      _
    $region29: #{tpu_custom_call.1} parent=1 // pred_fallthru
      _
    // Predicated region
    $region30: #{tpu_custom_call.1} parent=1 // pred_check
      _
    $region31: #{tpu_custom_call.1} parent=1 // pred_check_branch
      %73 = sbr.rel (0) target = $region33
    $region32: #{tpu_custom_call.1} parent=1 // pred_region
      %s75 = ssub.s32 1024, 1024
      %76 = vsyncadd [#allocation9], %s75
      %s77 = sshll.u32 [#allocation10], 4
      %s78 = int_to_ptr.vmem [resolvable:$true] %s77
      %83 = dma.hbm_to_vmem [thread:$0]  %s7, 1024, %s78, [#allocation9], 64, 64, 4
    $region33: #{tpu_custom_call.1} parent=1 // pred_fallthru
      _
    // Predicated region
    $region34: #{tpu_custom_call.1} parent=1 // pred_check
      _
    $region35: #{tpu_custom_call.1} parent=1 // pred_check_branch
      %85 = sbr.rel (0) target = $region37
    $region36: #{tpu_custom_call.1} parent=1 // pred_region
      _
    $region37: #{tpu_custom_call.1} parent=1 // pred_fallthru
      _
    // Predicated region
    $region38: #{tpu_custom_call.1} parent=1 // pred_check
      _
    $region39: #{tpu_custom_call.1} parent=1 // pred_check_branch
      %87 = sbr.rel (0) target = $region41
    $region40: #{tpu_custom_call.1} parent=1 // pred_region
      %88 = dma.done [#allocation3], 256
    $region41: #{tpu_custom_call.1} parent=1 // pred_fallthru
      _
    // Predicated region
    $region42: #{tpu_custom_call.1} parent=1 // pred_check
      _
    $region43: #{tpu_custom_call.1} parent=1 // pred_check_branch
      %90 = sbr.rel (0) target = $region45
    $region44: #{tpu_custom_call.1} parent=1 // pred_region
      %91 = dma.done [#allocation6], 512
    $region45: #{tpu_custom_call.1} parent=1 // pred_fallthru
      _
    // Predicated region
    $region46: #{tpu_custom_call.1} parent=1 // pred_check
      _
    $region47: #{tpu_custom_call.1} parent=1 // pred_check_branch
      %93 = sbr.rel (0) target = $region49
    $region48: #{tpu_custom_call.1} parent=1 // pred_region
      %94 = dma.done [#allocation6], 2048
    $region49: #{tpu_custom_call.1} parent=1 // pred_fallthru
      _
    // Predicated region
    $region50: #{tpu_custom_call.1} parent=1 // pred_check
      _
    $region51: #{tpu_custom_call.1} parent=1 // pred_check_branch
      %96 = sbr.rel (0) target = $region53
    $region52: #{tpu_custom_call.1} parent=1 // pred_region
      %97 = dma.done [#allocation9], 2048
    $region53: #{tpu_custom_call.1} parent=1 // pred_fallthru
      _
    // Predicated region
    $region54: #{tpu_custom_call.1} parent=1 // pred_check
      _
    $region55: #{tpu_custom_call.1} parent=1 // pred_check_branch
      %99 = sbr.rel (0) target = $region57
    $region56: #{tpu_custom_call.1} parent=1 // pred_region
      %100 = dma.done [#allocation9], 1024
    $region57: #{tpu_custom_call.1} parent=1 // pred_fallthru
      _
    %v102 = vld [vmem:[#allocation2] sm:$0xff]
    %v103 = vld [vmem:[#allocation2 + $0x8] sm:$0xff]
    %v104 = vmax.f32 %v102, 0.0
    %v105 = vmax.f32 %v103, 0.0
    %v106 = vpack.c.bf16 %v105, %v104
    %v107 = vld [vmem:[#allocation5] sm:$0xf]
    %v108 = vld [vmem:[#allocation5 + $0x4] sm:$0xf]
    %v109 = vld [vmem:[#allocation5 + $0x8] sm:$0xf]
    %v110 = vld [vmem:[#allocation5 + $0xc] sm:$0xf]
    %v111 = vld [vmem:[#allocation5 + $0x10] sm:$0xf]
    %v112 = vld [vmem:[#allocation5 + $0x14] sm:$0xf]
    %v113 = vld [vmem:[#allocation5 + $0x18] sm:$0xf]
    %v114 = vld [vmem:[#allocation5 + $0x1c] sm:$0xf]
    %v115 = vld [vmem:[%s2] sm:$0x1]
    %v117 = vlaneseq
    %v118 = vshrl.u32 %v117, 7
    %v119 = vsub.s32 0, %v118
    %v120 = vrot.slane %v115, %v119
    %v130 = vunpack.c.l.b16 %v107
    %v131 = vunpack.c.l.b16 %v108
    %v132 = vunpack.c.l.b16 %v109
    %v133 = vunpack.c.l.b16 %v110
    %v134 = vunpack.c.l.b16 %v111
    %v135 = vunpack.c.l.b16 %v112
    %v136 = vunpack.c.l.b16 %v113
    %v137 = vunpack.c.l.b16 %v114
    %v138 = vpack.c.b16 %v131, %v130
    %v139 = vpack.c.b16 %v133, %v132
    %v140 = vpack.c.b16 %v135, %v134
    %v141 = vpack.c.b16 %v137, %v136
    %vm146 = vcmask 523264
    %v148 = vsel %vm146, %v106, 0
    %150 = vmatprep.subr.bf16.mxu0 0
    %151 = vmatpush1.bf16.msra.mxu0 %v138
    %152 = vmatprep.subr.bf16.mxu0 0
    %153 = vmatpush1.bf16.msra.mxu0 %v139
    %154 = vmatprep.subr.bf16.mxu0 0
    %155 = vmatpush1.bf16.msra.mxu0 %v140
    %156 = vmatprep.subr.bf16.mxu0 0
    %157 = vmatpush1.bf16.msra.mxu0 %v141
    %158 = vmatprep.subr.bf16.mxu0 0
    %159 = vmatpush1.bf16.msra.mxu0 0
    %160 = vmatprep.subr.bf16.mxu0 0
    %161 = vmatpush1.bf16.msra.mxu0 0
    %162 = vmatprep.subr.bf16.mxu0 0
    %163 = vmatpush1.bf16.msra.mxu0 0
    %164 = vmatprep.subr.bf16.mxu0 0
    %165 = vmatpush1.bf16.msra.mxu0 0
    %166 = vmatprep.subr.bf16.mxu0 0
    %167 = vmatpush1.bf16.msra.mxu0 0
    %168 = vmatprep.subr.bf16.mxu0 0
    %169 = vmatpush1.bf16.msra.mxu0 0
    %170 = vmatprep.subr.bf16.mxu0 0
    %171 = vmatpush1.bf16.msra.mxu0 0
    %172 = vmatprep.subr.bf16.mxu0 0
    %173 = vmatpush1.bf16.msra.mxu0 0
    %174 = vmatprep.subr.bf16.mxu0 0
    %175 = vmatpush1.bf16.msra.mxu0 0
    %176 = vmatprep.subr.bf16.mxu0 0
    %177 = vmatpush1.bf16.msra.mxu0 0
    %178 = vmatprep.subr.bf16.mxu0 0
    %179 = vmatpush1.bf16.msra.mxu0 0
    %180 = vmatprep.subr.bf16.mxu0 0
    %181 = vmatpush1.bf16.msra.mxu0 0
    %182 = vmatprep.mubr.bf16.mxu0 0
    %183 = vmatmul.mubr.bf16.gmra.mrb[0].mxu0 %v148
    %v184 = vpop.f32.mrb[0].mxu0
    %v185 = vadd.f32 %v120, %v184
    %v186 = vpop.f32.mrb[0].mxu0
    %v187 = vpop.f32.mrb[0].mxu0
    %v188 = vadd.f32 %v120, %v187
    %v189 = vpop.f32.mrb[0].mxu0
    %190 = vdwg.mxu0
    %v191 = vmax.f32 %v185, 0.0
    %v192 = vmax.f32 %v188, 0.0
    %v193 = vpack.c.bf16 %v192, %v191
    %v194 = vld [vmem:[#allocation7] sm:$0xf]
    %v195 = vld [vmem:[#allocation7 + $0x4] sm:$0xf]
    %v196 = vld [vmem:[#allocation7 + $0x8] sm:$0xf]
    %v197 = vld [vmem:[#allocation7 + $0xc] sm:$0xf]
    %v198 = vld [vmem:[#allocation7 + $0x10] sm:$0xf]
    %v199 = vld [vmem:[#allocation7 + $0x14] sm:$0xf]
    %v200 = vld [vmem:[#allocation7 + $0x18] sm:$0xf]
    %v201 = vld [vmem:[#allocation7 + $0x1c] sm:$0xf]
    %v202 = vld [vmem:[#allocation7 + $0x20] sm:$0xf]
    %v203 = vld [vmem:[#allocation7 + $0x24] sm:$0xf]
    %v204 = vld [vmem:[#allocation7 + $0x28] sm:$0xf]
    %v205 = vld [vmem:[#allocation7 + $0x2c] sm:$0xf]
    %v206 = vld [vmem:[#allocation7 + $0x30] sm:$0xf]
    %v207 = vld [vmem:[#allocation7 + $0x34] sm:$0xf]
    %v208 = vld [vmem:[#allocation7 + $0x38] sm:$0xf]
    %v209 = vld [vmem:[#allocation7 + $0x3c] sm:$0xf]
    %v210 = vld [vmem:[%s4] sm:$0x1]
    %v212 = vlaneseq
    %v213 = vshrl.u32 %v212, 7
    %v214 = vsub.s32 0, %v213
    %v215 = vrot.slane %v210, %v214
    %v233 = vunpack.c.l.b16 %v194
    %v234 = vunpack.c.l.b16 %v195
    %v235 = vunpack.c.l.b16 %v196
    %v236 = vunpack.c.l.b16 %v197
    %v237 = vunpack.c.l.b16 %v198
    %v238 = vunpack.c.l.b16 %v199
    %v239 = vunpack.c.l.b16 %v200
    %v240 = vunpack.c.l.b16 %v201
    %v241 = vunpack.c.l.b16 %v202
    %v242 = vunpack.c.l.b16 %v203
    %v243 = vunpack.c.l.b16 %v204
    %v244 = vunpack.c.l.b16 %v205
    %v245 = vunpack.c.l.b16 %v206
    %v246 = vunpack.c.l.b16 %v207
    %v247 = vunpack.c.l.b16 %v208
    %v248 = vunpack.c.l.b16 %v209
    %v249 = vpack.c.b16 %v234, %v233
    %v250 = vpack.c.b16 %v236, %v235
    %v251 = vpack.c.b16 %v238, %v237
    %v252 = vpack.c.b16 %v240, %v239
    %v253 = vpack.c.b16 %v242, %v241
    %v254 = vpack.c.b16 %v244, %v243
    %v255 = vpack.c.b16 %v246, %v245
    %v256 = vpack.c.b16 %v248, %v247
    %265 = vmatprep.subr.bf16.mxu0 0
    %266 = vmatpush1.bf16.msra.mxu0 %v249
    %267 = vmatprep.subr.bf16.mxu0 0
    %268 = vmatpush1.bf16.msra.mxu0 %v250
    %269 = vmatprep.subr.bf16.mxu0 0
    %270 = vmatpush1.bf16.msra.mxu0 %v251
    %271 = vmatprep.subr.bf16.mxu0 0
    %272 = vmatpush1.bf16.msra.mxu0 %v252
    %273 = vmatprep.subr.bf16.mxu0 0
    %274 = vmatpush1.bf16.msra.mxu0 %v253
    %275 = vmatprep.subr.bf16.mxu0 0
    %276 = vmatpush1.bf16.msra.mxu0 %v254
    %277 = vmatprep.subr.bf16.mxu0 0
    %278 = vmatpush1.bf16.msra.mxu0 %v255
    %279 = vmatprep.subr.bf16.mxu0 0
    %280 = vmatpush1.bf16.msra.mxu0 %v256
    %281 = vmatprep.subr.bf16.mxu0 0
    %282 = vmatpush1.bf16.msra.mxu0 0
    %283 = vmatprep.subr.bf16.mxu0 0
    %284 = vmatpush1.bf16.msra.mxu0 0
    %285 = vmatprep.subr.bf16.mxu0 0
    %286 = vmatpush1.bf16.msra.mxu0 0
    %287 = vmatprep.subr.bf16.mxu0 0
    %288 = vmatpush1.bf16.msra.mxu0 0
    %289 = vmatprep.subr.bf16.mxu0 0
    %290 = vmatpush1.bf16.msra.mxu0 0
    %291 = vmatprep.subr.bf16.mxu0 0
    %292 = vmatpush1.bf16.msra.mxu0 0
    %293 = vmatprep.subr.bf16.mxu0 0
    %294 = vmatpush1.bf16.msra.mxu0 0
    %295 = vmatprep.subr.bf16.mxu0 0
    %296 = vmatpush1.bf16.msra.mxu0 0
    %297 = vmatprep.mubr.bf16.mxu0 0
    %298 = vmatmul.mubr.bf16.gmra.mrb[0].mxu0 %v193
    %v299 = vpop.f32.mrb[0].mxu0
    %v300 = vadd.f32 %v215, %v299
    %v301 = vpop.f32.mrb[0].mxu0
    %v302 = vpop.f32.mrb[0].mxu0
    %v303 = vadd.f32 %v215, %v302
    %v304 = vpop.f32.mrb[0].mxu0
    %305 = vdwg.mxu0
    %v306 = vmax.f32 %v300, 0.0
    %v307 = vmax.f32 %v303, 0.0
    %v308 = vpack.c.bf16 %v307, %v306
    %v309 = vld [vmem:[#allocation8] sm:$0xf]
    %v310 = vld [vmem:[#allocation8 + $0x4] sm:$0xf]
    %v311 = vld [vmem:[#allocation8 + $0x8] sm:$0xf]
    %v312 = vld [vmem:[#allocation8 + $0xc] sm:$0xf]
    %v313 = vld [vmem:[#allocation8 + $0x10] sm:$0xf]
    %v314 = vld [vmem:[#allocation8 + $0x14] sm:$0xf]
    %v315 = vld [vmem:[#allocation8 + $0x18] sm:$0xf]
    %v316 = vld [vmem:[#allocation8 + $0x1c] sm:$0xf]
    %v317 = vld [vmem:[#allocation8 + $0x20] sm:$0xf]
    %v318 = vld [vmem:[#allocation8 + $0x24] sm:$0xf]
    %v319 = vld [vmem:[#allocation8 + $0x28] sm:$0xf]
    %v320 = vld [vmem:[#allocation8 + $0x2c] sm:$0xf]
    %v321 = vld [vmem:[#allocation8 + $0x30] sm:$0xf]
    %v322 = vld [vmem:[#allocation8 + $0x34] sm:$0xf]
    %v323 = vld [vmem:[#allocation8 + $0x38] sm:$0xf]
    %v324 = vld [vmem:[#allocation8 + $0x3c] sm:$0xf]
    %v325 = vld [vmem:[%s6] sm:$0x1]
    %v327 = vlaneseq
    %v328 = vshrl.u32 %v327, 7
    %v329 = vsub.s32 0, %v328
    %v330 = vrot.slane %v325, %v329
    %v348 = vunpack.c.l.b16 %v309
    %v349 = vunpack.c.l.b16 %v310
    %v350 = vunpack.c.l.b16 %v311
    %v351 = vunpack.c.l.b16 %v312
    %v352 = vunpack.c.l.b16 %v313
    %v353 = vunpack.c.l.b16 %v314
    %v354 = vunpack.c.l.b16 %v315
    %v355 = vunpack.c.l.b16 %v316
    %v356 = vunpack.c.l.b16 %v317
    %v357 = vunpack.c.l.b16 %v318
    %v358 = vunpack.c.l.b16 %v319
    %v359 = vunpack.c.l.b16 %v320
    %v360 = vunpack.c.l.b16 %v321
    %v361 = vunpack.c.l.b16 %v322
    %v362 = vunpack.c.l.b16 %v323
    %v363 = vunpack.c.l.b16 %v324
    %v364 = vpack.c.b16 %v349, %v348
    %v365 = vpack.c.b16 %v351, %v350
    %v366 = vpack.c.b16 %v353, %v352
    %v367 = vpack.c.b16 %v355, %v354
    %v368 = vpack.c.b16 %v357, %v356
    %v369 = vpack.c.b16 %v359, %v358
    %v370 = vpack.c.b16 %v361, %v360
    %v371 = vpack.c.b16 %v363, %v362
    %380 = vmatprep.subr.bf16.mxu0 0
    %381 = vmatpush1.bf16.msra.mxu0 %v364
    %382 = vmatprep.subr.bf16.mxu0 0
    %383 = vmatpush1.bf16.msra.mxu0 %v365
    %384 = vmatprep.subr.bf16.mxu0 0
    %385 = vmatpush1.bf16.msra.mxu0 %v366
    %386 = vmatprep.subr.bf16.mxu0 0
    %387 = vmatpush1.bf16.msra.mxu0 %v367
    %388 = vmatprep.subr.bf16.mxu0 0
    %389 = vmatpush1.bf16.msra.mxu0 %v368
    %390 = vmatprep.subr.bf16.mxu0 0
    %391 = vmatpush1.bf16.msra.mxu0 %v369
    %392 = vmatprep.subr.bf16.mxu0 0
    %393 = vmatpush1.bf16.msra.mxu0 %v370
    %394 = vmatprep.subr.bf16.mxu0 0
    %395 = vmatpush1.bf16.msra.mxu0 %v371
    %396 = vmatprep.subr.bf16.mxu0 0
    %397 = vmatpush1.bf16.msra.mxu0 0
    %398 = vmatprep.subr.bf16.mxu0 0
    %399 = vmatpush1.bf16.msra.mxu0 0
    %400 = vmatprep.subr.bf16.mxu0 0
    %401 = vmatpush1.bf16.msra.mxu0 0
    %402 = vmatprep.subr.bf16.mxu0 0
    %403 = vmatpush1.bf16.msra.mxu0 0
    %404 = vmatprep.subr.bf16.mxu0 0
    %405 = vmatpush1.bf16.msra.mxu0 0
    %406 = vmatprep.subr.bf16.mxu0 0
    %407 = vmatpush1.bf16.msra.mxu0 0
    %408 = vmatprep.subr.bf16.mxu0 0
    %409 = vmatpush1.bf16.msra.mxu0 0
    %410 = vmatprep.subr.bf16.mxu0 0
    %411 = vmatpush1.bf16.msra.mxu0 0
    %412 = vmatprep.mubr.bf16.mxu0 0
    %413 = vmatmul.mubr.bf16.gmra.mrb[0].mxu0 %v308
    %v414 = vpop.f32.mrb[0].mxu0
    %v415 = vadd.f32 %v330, %v414
    %v416 = vpop.f32.mrb[0].mxu0
    %v417 = vpop.f32.mrb[0].mxu0
    %v418 = vadd.f32 %v330, %v417
    %v419 = vpop.f32.mrb[0].mxu0
    %420 = vdwg.mxu0
    %v421 = vadd.f32 %v415, %v185
    %v422 = vadd.f32 %v418, %v188
    %v423 = vmax.f32 %v421, 0.0
    %v424 = vmax.f32 %v422, 0.0
    %v425 = vpack.c.bf16 %v424, %v423
    %s426 = scalar_lea.vmem [#allocation7], 64
    %v427 = vld [vmem:[%s426] sm:$0xf]
    %v428 = vld [vmem:[%s426 + $0x4] sm:$0xf]
    %v429 = vld [vmem:[%s426 + $0x8] sm:$0xf]
    %v430 = vld [vmem:[%s426 + $0xc] sm:$0xf]
    %v431 = vld [vmem:[%s426 + $0x10] sm:$0xf]
    %v432 = vld [vmem:[%s426 + $0x14] sm:$0xf]
    %v433 = vld [vmem:[%s426 + $0x18] sm:$0xf]
    %v434 = vld [vmem:[%s426 + $0x1c] sm:$0xf]
    %v435 = vld [vmem:[%s426 + $0x20] sm:$0xf]
    %v436 = vld [vmem:[%s426 + $0x24] sm:$0xf]
    %v437 = vld [vmem:[%s426 + $0x28] sm:$0xf]
    %v438 = vld [vmem:[%s426 + $0x2c] sm:$0xf]
    %v439 = vld [vmem:[%s426 + $0x30] sm:$0xf]
    %v440 = vld [vmem:[%s426 + $0x34] sm:$0xf]
    %v441 = vld [vmem:[%s426 + $0x38] sm:$0xf]
    %v442 = vld [vmem:[%s426 + $0x3c] sm:$0xf]
    %s443 = scalar_lea.vmem %s4, 1
    %v444 = vld [vmem:[%s443] sm:$0x1]
    %v446 = vlaneseq
    %v447 = vshrl.u32 %v446, 7
    %v448 = vsub.s32 0, %v447
    %v449 = vrot.slane %v444, %v448
    %v467 = vunpack.c.l.b16 %v427
    %v468 = vunpack.c.l.b16 %v428
    %v469 = vunpack.c.l.b16 %v429
    %v470 = vunpack.c.l.b16 %v430
    %v471 = vunpack.c.l.b16 %v431
    %v472 = vunpack.c.l.b16 %v432
    %v473 = vunpack.c.l.b16 %v433
    %v474 = vunpack.c.l.b16 %v434
    %v475 = vunpack.c.l.b16 %v435
    %v476 = vunpack.c.l.b16 %v436
    %v477 = vunpack.c.l.b16 %v437
    %v478 = vunpack.c.l.b16 %v438
    %v479 = vunpack.c.l.b16 %v439
    %v480 = vunpack.c.l.b16 %v440
    %v481 = vunpack.c.l.b16 %v441
    %v482 = vunpack.c.l.b16 %v442
    %v483 = vpack.c.b16 %v468, %v467
    %v484 = vpack.c.b16 %v470, %v469
    %v485 = vpack.c.b16 %v472, %v471
    %v486 = vpack.c.b16 %v474, %v473
    %v487 = vpack.c.b16 %v476, %v475
    %v488 = vpack.c.b16 %v478, %v477
    %v489 = vpack.c.b16 %v480, %v479
    %v490 = vpack.c.b16 %v482, %v481
    %499 = vmatprep.subr.bf16.mxu0 0
    %500 = vmatpush1.bf16.msra.mxu0 %v483
    %501 = vmatprep.subr.bf16.mxu0 0
    %502 = vmatpush1.bf16.msra.mxu0 %v484
    %503 = vmatprep.subr.bf16.mxu0 0
    %504 = vmatpush1.bf16.msra.mxu0 %v485
    %505 = vmatprep.subr.bf16.mxu0 0
    %506 = vmatpush1.bf16.msra.mxu0 %v486
    %507 = vmatprep.subr.bf16.mxu0 0
    %508 = vmatpush1.bf16.msra.mxu0 %v487
    %509 = vmatprep.subr.bf16.mxu0 0
    %510 = vmatpush1.bf16.msra.mxu0 %v488
    %511 = vmatprep.subr.bf16.mxu0 0
    %512 = vmatpush1.bf16.msra.mxu0 %v489
    %513 = vmatprep.subr.bf16.mxu0 0
    %514 = vmatpush1.bf16.msra.mxu0 %v490
    %515 = vmatprep.subr.bf16.mxu0 0
    %516 = vmatpush1.bf16.msra.mxu0 0
    %517 = vmatprep.subr.bf16.mxu0 0
    %518 = vmatpush1.bf16.msra.mxu0 0
    %519 = vmatprep.subr.bf16.mxu0 0
    %520 = vmatpush1.bf16.msra.mxu0 0
    %521 = vmatprep.subr.bf16.mxu0 0
    %522 = vmatpush1.bf16.msra.mxu0 0
    %523 = vmatprep.subr.bf16.mxu0 0
    %524 = vmatpush1.bf16.msra.mxu0 0
    %525 = vmatprep.subr.bf16.mxu0 0
    %526 = vmatpush1.bf16.msra.mxu0 0
    %527 = vmatprep.subr.bf16.mxu0 0
    %528 = vmatpush1.bf16.msra.mxu0 0
    %529 = vmatprep.subr.bf16.mxu0 0
    %530 = vmatpush1.bf16.msra.mxu0 0
    %531 = vmatprep.mubr.bf16.mxu0 0
    %532 = vmatmul.mubr.bf16.gmra.mrb[0].mxu0 %v425
    %v533 = vpop.f32.mrb[0].mxu0
    %v534 = vadd.f32 %v449, %v533
    %v535 = vpop.f32.mrb[0].mxu0
    %v536 = vpop.f32.mrb[0].mxu0
    %v537 = vadd.f32 %v449, %v536
    %v538 = vpop.f32.mrb[0].mxu0
    %539 = vdwg.mxu0
    %v540 = vmax.f32 %v534, 0.0
    %v541 = vmax.f32 %v537, 0.0
    %v542 = vpack.c.bf16 %v541, %v540
    %s543 = scalar_lea.vmem [#allocation8], 64
    %v544 = vld [vmem:[%s543] sm:$0xf]
    %v545 = vld [vmem:[%s543 + $0x4] sm:$0xf]
    %v546 = vld [vmem:[%s543 + $0x8] sm:$0xf]
    %v547 = vld [vmem:[%s543 + $0xc] sm:$0xf]
    %v548 = vld [vmem:[%s543 + $0x10] sm:$0xf]
    %v549 = vld [vmem:[%s543 + $0x14] sm:$0xf]
    %v550 = vld [vmem:[%s543 + $0x18] sm:$0xf]
    %v551 = vld [vmem:[%s543 + $0x1c] sm:$0xf]
    %v552 = vld [vmem:[%s543 + $0x20] sm:$0xf]
    %v553 = vld [vmem:[%s543 + $0x24] sm:$0xf]
    %v554 = vld [vmem:[%s543 + $0x28] sm:$0xf]
    %v555 = vld [vmem:[%s543 + $0x2c] sm:$0xf]
    %v556 = vld [vmem:[%s543 + $0x30] sm:$0xf]
    %v557 = vld [vmem:[%s543 + $0x34] sm:$0xf]
    %v558 = vld [vmem:[%s543 + $0x38] sm:$0xf]
    %v559 = vld [vmem:[%s543 + $0x3c] sm:$0xf]
    %s560 = scalar_lea.vmem %s6, 1
    %v561 = vld [vmem:[%s560] sm:$0x1]
    %v563 = vlaneseq
    %v564 = vshrl.u32 %v563, 7
    %v565 = vsub.s32 0, %v564
    %v566 = vrot.slane %v561, %v565
    %v584 = vunpack.c.l.b16 %v544
    %v585 = vunpack.c.l.b16 %v545
    %v586 = vunpack.c.l.b16 %v546
    %v587 = vunpack.c.l.b16 %v547
    %v588 = vunpack.c.l.b16 %v548
    %v589 = vunpack.c.l.b16 %v549
    %v590 = vunpack.c.l.b16 %v550
    %v591 = vunpack.c.l.b16 %v551
    %v592 = vunpack.c.l.b16 %v552
    %v593 = vunpack.c.l.b16 %v553
    %v594 = vunpack.c.l.b16 %v554
    %v595 = vunpack.c.l.b16 %v555
    %v596 = vunpack.c.l.b16 %v556
    %v597 = vunpack.c.l.b16 %v557
    %v598 = vunpack.c.l.b16 %v558
    %v599 = vunpack.c.l.b16 %v559
    %v600 = vpack.c.b16 %v585, %v584
    %v601 = vpack.c.b16 %v587, %v586
    %v602 = vpack.c.b16 %v589, %v588
    %v603 = vpack.c.b16 %v591, %v590
    %v604 = vpack.c.b16 %v593, %v592
    %v605 = vpack.c.b16 %v595, %v594
    %v606 = vpack.c.b16 %v597, %v596
    %v607 = vpack.c.b16 %v599, %v598
    %616 = vmatprep.subr.bf16.mxu0 0
    %617 = vmatpush1.bf16.msra.mxu0 %v600
    %618 = vmatprep.subr.bf16.mxu0 0
    %619 = vmatpush1.bf16.msra.mxu0 %v601
    %620 = vmatprep.subr.bf16.mxu0 0
    %621 = vmatpush1.bf16.msra.mxu0 %v602
    %622 = vmatprep.subr.bf16.mxu0 0
    %623 = vmatpush1.bf16.msra.mxu0 %v603
    %624 = vmatprep.subr.bf16.mxu0 0
    %625 = vmatpush1.bf16.msra.mxu0 %v604
    %626 = vmatprep.subr.bf16.mxu0 0
    %627 = vmatpush1.bf16.msra.mxu0 %v605
    %628 = vmatprep.subr.bf16.mxu0 0
    %629 = vmatpush1.bf16.msra.mxu0 %v606
    %630 = vmatprep.subr.bf16.mxu0 0
    %631 = vmatpush1.bf16.msra.mxu0 %v607
    %632 = vmatprep.subr.bf16.mxu0 0
    %633 = vmatpush1.bf16.msra.mxu0 0
    %634 = vmatprep.subr.bf16.mxu0 0
    %635 = vmatpush1.bf16.msra.mxu0 0
    %636 = vmatprep.subr.bf16.mxu0 0
    %637 = vmatpush1.bf16.msra.mxu0 0
    %638 = vmatprep.subr.bf16.mxu0 0
    %639 = vmatpush1.bf16.msra.mxu0 0
    %640 = vmatprep.subr.bf16.mxu0 0
    %641 = vmatpush1.bf16.msra.mxu0 0
    %642 = vmatprep.subr.bf16.mxu0 0
    %643 = vmatpush1.bf16.msra.mxu0 0
    %644 = vmatprep.subr.bf16.mxu0 0
    %645 = vmatpush1.bf16.msra.mxu0 0
    %646 = vmatprep.subr.bf16.mxu0 0
    %647 = vmatpush1.bf16.msra.mxu0 0
    %648 = vmatprep.mubr.bf16.mxu0 0
    %649 = vmatmul.mubr.bf16.gmra.mrb[0].mxu0 %v542
    %v650 = vpop.f32.mrb[0].mxu0
    %v651 = vadd.f32 %v566, %v650
    %v652 = vpop.f32.mrb[0].mxu0
    %v653 = vpop.f32.mrb[0].mxu0
    %v654 = vadd.f32 %v566, %v653
    %v655 = vpop.f32.mrb[0].mxu0
    %656 = vdwg.mxu0
    %v657 = vadd.f32 %v651, %v421
    %v658 = vadd.f32 %v654, %v422
    %v659 = vmax.f32 %v657, 0.0
    %v660 = vmax.f32 %v658, 0.0
    %v661 = vpack.c.bf16 %v660, %v659
    %v662 = vld [vmem:[#allocation10] sm:$0xf]
    %v663 = vld [vmem:[#allocation10 + $0x4] sm:$0xf]
    %v664 = vld [vmem:[#allocation10 + $0x8] sm:$0xf]
    %v665 = vld [vmem:[#allocation10 + $0xc] sm:$0xf]
    %v666 = vld [vmem:[#allocation10 + $0x10] sm:$0xf]
    %v667 = vld [vmem:[#allocation10 + $0x14] sm:$0xf]
    %v668 = vld [vmem:[#allocation10 + $0x18] sm:$0xf]
    %v669 = vld [vmem:[#allocation10 + $0x1c] sm:$0xf]
    %v670 = vld [vmem:[#allocation10 + $0x20] sm:$0xf]
    %v671 = vld [vmem:[#allocation10 + $0x24] sm:$0xf]
    %v672 = vld [vmem:[#allocation10 + $0x28] sm:$0xf]
    %v673 = vld [vmem:[#allocation10 + $0x2c] sm:$0xf]
    %v674 = vld [vmem:[#allocation10 + $0x30] sm:$0xf]
    %v675 = vld [vmem:[#allocation10 + $0x34] sm:$0xf]
    %v676 = vld [vmem:[#allocation10 + $0x38] sm:$0xf]
    %v677 = vld [vmem:[#allocation10 + $0x3c] sm:$0xf]
    %v678 = vld [vmem:[%s8] sm:$0x1]
    %v680 = vlaneseq
    %v681 = vshrl.u32 %v680, 7
    %v682 = vsub.s32 0, %v681
    %v683 = vrot.slane %v678, %v682
    %v701 = vunpack.c.l.b16 %v662
    %v702 = vunpack.c.l.b16 %v663
    %v703 = vunpack.c.l.b16 %v664
    %v704 = vunpack.c.l.b16 %v665
    %v705 = vunpack.c.l.b16 %v666
    %v706 = vunpack.c.l.b16 %v667
    %v707 = vunpack.c.l.b16 %v668
    %v708 = vunpack.c.l.b16 %v669
    %v709 = vunpack.c.l.b16 %v670
    %v710 = vunpack.c.l.b16 %v671
    %v711 = vunpack.c.l.b16 %v672
    %v712 = vunpack.c.l.b16 %v673
    %v713 = vunpack.c.l.b16 %v674
    %v714 = vunpack.c.l.b16 %v675
    %v715 = vunpack.c.l.b16 %v676
    %v716 = vunpack.c.l.b16 %v677
    %v717 = vpack.c.b16 %v702, %v701
    %v718 = vpack.c.b16 %v704, %v703
    %v719 = vpack.c.b16 %v706, %v705
    %v720 = vpack.c.b16 %v708, %v707
    %v721 = vpack.c.b16 %v710, %v709
    %v722 = vpack.c.b16 %v712, %v711
    %v723 = vpack.c.b16 %v714, %v713
    %v724 = vpack.c.b16 %v716, %v715
    %733 = vmatprep.subr.bf16.mxu0 0
    %734 = vmatpush1.bf16.msra.mxu0 %v717
    %735 = vmatprep.subr.bf16.mxu0 0
    %736 = vmatpush1.bf16.msra.mxu0 %v718
    %737 = vmatprep.subr.bf16.mxu0 0
    %738 = vmatpush1.bf16.msra.mxu0 %v719
    %739 = vmatprep.subr.bf16.mxu0 0
    %740 = vmatpush1.bf16.msra.mxu0 %v720
    %741 = vmatprep.subr.bf16.mxu0 0
    %742 = vmatpush1.bf16.msra.mxu0 %v721
    %743 = vmatprep.subr.bf16.mxu0 0
    %744 = vmatpush1.bf16.msra.mxu0 %v722
    %745 = vmatprep.subr.bf16.mxu0 0
    %746 = vmatpush1.bf16.msra.mxu0 %v723
    %747 = vmatprep.subr.bf16.mxu0 0
    %748 = vmatpush1.bf16.msra.mxu0 %v724
    %749 = vmatprep.subr.bf16.mxu0 0
    %750 = vmatpush1.bf16.msra.mxu0 0
    %751 = vmatprep.subr.bf16.mxu0 0
    %752 = vmatpush1.bf16.msra.mxu0 0
    %753 = vmatprep.subr.bf16.mxu0 0
    %754 = vmatpush1.bf16.msra.mxu0 0
    %755 = vmatprep.subr.bf16.mxu0 0
    %756 = vmatpush1.bf16.msra.mxu0 0
    %757 = vmatprep.subr.bf16.mxu0 0
    %758 = vmatpush1.bf16.msra.mxu0 0
    %759 = vmatprep.subr.bf16.mxu0 0
    %760 = vmatpush1.bf16.msra.mxu0 0
    %761 = vmatprep.subr.bf16.mxu0 0
    %762 = vmatpush1.bf16.msra.mxu0 0
    %763 = vmatprep.subr.bf16.mxu0 0
    %764 = vmatpush1.bf16.msra.mxu0 0
    %765 = vmatprep.mubr.bf16.mxu0 0
    %766 = vmatmul.mubr.bf16.gmra.mrb[0].mxu0 %v661
    %v767 = vpop.f32.mrb[0].mxu0
    %v768 = vadd.f32 %v683, %v767
    %v769 = vpop.f32.mrb[0].mxu0
    %v770 = vpop.f32.mrb[0].mxu0
    %v771 = vadd.f32 %v683, %v770
    %v772 = vpop.f32.mrb[0].mxu0
    %773 = vdwg.mxu0
    %774 = vst [vmem:[#allocation11] sm:$0xff] %v768
    %775 = vst [vmem:[#allocation11 + $0x8] sm:$0xff] %v771
    // Predicated region
    $region58: #{tpu_custom_call.1} parent=1 // pred_check
      _
    $region59: #{tpu_custom_call.1} parent=1 // pred_check_branch
      %777 = sbr.rel (0) target = $region61
    $region60: #{tpu_custom_call.1} parent=1 // pred_region
      %s779 = ssub.s32 256, 256
      %780 = vsyncadd [#allocation4], %s779
      %s781 = sshll.u32 [#allocation11], 4
      %s782 = int_to_ptr.vmem [resolvable:$true] %s781
      %787 = dma.vmem_to_hbm [thread:$0]  %s782, 256, %s9, [#allocation4], 128, 128, 8
    $region61: #{tpu_custom_call.1} parent=1 // pred_fallthru
      _
    // Predicated region
    $region62: #{tpu_custom_call.1} parent=1 // pred_check
      _
    $region63: #{tpu_custom_call.1} parent=1 // pred_check_branch
      %789 = sbr.rel (0) target = $region65
    $region64: #{tpu_custom_call.1} parent=1 // pred_region
      %790 = dma.done [#allocation4], 256
    $region65: #{tpu_custom_call.1} parent=1 // pred_fallthru
      _
    %791 = vsyncpa [#allocation3], 1
    %792 = vsyncpa [#allocation6], 1
    %793 = vsyncpa [#allocation9], 1
    %794 = vsyncpa [#allocation4], 1

</llo_original>
